<compile_context>
chip_gen: v6e
topology: v6e:2x2x1
jax: 0.10.0
libtpu: 0.0.40
codegen_flags: <defaults>
</compile_context>

<pallas_src>
import functools

import jax
import jax.numpy as jnp
from jax.experimental import pallas as pl
from jax.experimental.pallas import tpu as pltpu

# TODO(synk): nn.Dropout(p=0.5) is modeled in eval/inference mode (identity); training-mode
#             stochastic masking is not reproduced here.


def _round_up(n: int, m: int) -> int:
    return ((n + m - 1) // m) * m


def _make_kernel(h_pad: int):
    Hp = h_pad  # each gate occupies a full multiple-of-128-lane group

    def kernel(x_ref, w_gate_ref, b_gate_ref, w_fc_ref, b_fc_ref, out_ref):
        # x_ref:      (TB, D_in)     bf16
        # w_gate_ref: (D_in, 3*Hp)   bf16   gate layout [i | g | o] (forget gate dropped)
        # b_gate_ref: (1, 3*Hp)      f32    (b_ih + b_hh), zero in padded lanes
        # w_fc_ref:   (Hp, Cp)       bf16   zero in padded rows/cols
        # b_fc_ref:   (1, Cp)        f32    zero in padded lanes
        # out_ref:    (TB, Cp)       f32
        gates = jnp.dot(
            x_ref[...], w_gate_ref[...], preferred_element_type=jnp.float32
        ) + b_gate_ref[...]

        # Slices fall on whole 128-lane groups -> no cross-lane relayout.
        i_g = jax.nn.sigmoid(gates[:, 0 * Hp:1 * Hp])
        g_g = jnp.tanh(gates[:, 1 * Hp:2 * Hp])
        o_g = jax.nn.sigmoid(gates[:, 2 * Hp:3 * Hp])

        # c = f*c0 + i*g with c0 == 0.  Padded lanes: sigmoid(0)*tanh(0.5*0) == 0 exactly.
        h = o_g * jnp.tanh(i_g * g_g)

        out_ref[...] = jnp.dot(
            h.astype(w_fc_ref.dtype), w_fc_ref[...],
            preferred_element_type=jnp.float32,
        ) + b_fc_ref[...]

    return kernel


@functools.partial(jax.jit, static_argnames=("batch_block",))
def lstm_classifier_forward(x, w_ih, w_hh, b_ih, b_hh, w_fc, b_fc, *, batch_block=512):
    """x: (B, D_in) float32. Weights follow PyTorch nn.LSTM / nn.Linear shapes:
       w_ih: (4H, D_in), w_hh: (4H, H), b_ih/b_hh: (4H,), w_fc: (C, H), b_fc: (C,)."""
    del w_hh  # multiplied by h0 == 0 for the single step; contributes nothing
    B, D_in = x.shape
    H = w_ih.shape[0] // 4
    C = w_fc.shape[0]
    Hp = _round_up(H, 128)   # each gate gets whole 128-lane groups
    Cp = _round_up(C, 128)   # lane-dense output (unmasked stores)

    b_gate_full = b_ih + b_hh

    # ---- glue: reorder/pad weights, cast MXU operands to bf16 (f32 accumulation in-kernel).
    # PyTorch gate order along rows of w_ih is [i | f | g | o]; the forget gate is dropped.
    w_gate_t = jnp.zeros((D_in, 3 * Hp), jnp.float32)
    w_gate_t = w_gate_t.at[:, 0 * Hp:0 * Hp + H].set(w_ih[0 * H:1 * H].T)   # i
    w_gate_t = w_gate_t.at[:, 1 * Hp:1 * Hp + H].set(w_ih[2 * H:3 * H].T)   # g
    w_gate_t = w_gate_t.at[:, 2 * Hp:2 * Hp + H].set(w_ih[3 * H:4 * H].T)   # o
    w_gate_t = w_gate_t.astype(jnp.bfloat16)

    b_gate = jnp.zeros((1, 3 * Hp), jnp.float32)
    b_gate = b_gate.at[0, 0 * Hp:0 * Hp + H].set(b_gate_full[0 * H:1 * H])
    b_gate = b_gate.at[0, 1 * Hp:1 * Hp + H].set(b_gate_full[2 * H:3 * H])
    b_gate = b_gate.at[0, 2 * Hp:2 * Hp + H].set(b_gate_full[3 * H:4 * H])

    w_fc_t = jnp.zeros((Hp, Cp), jnp.float32).at[:H, :C].set(w_fc.T).astype(jnp.bfloat16)
    b_fc_p = jnp.zeros((1, Cp), jnp.float32).at[0, :C].set(b_fc)

    x_b = x.astype(jnp.bfloat16)
    kernel = _make_kernel(Hp)
    vmem = pltpu.MemorySpace.VMEM

    if B <= batch_block:
        # Small batch: everything fits in a few KiB of VMEM -> no grid, no pipeline machinery.
        out_p = pl.pallas_call(
            kernel,
            out_shape=jax.ShapeDtypeStruct((B, Cp), jnp.float32),
            in_specs=[pl.BlockSpec(memory_space=vmem)] * 5,
            out_specs=pl.BlockSpec(memory_space=vmem),
        )(x_b, w_gate_t, b_gate, w_fc_t, b_fc_p)
        return out_p[:, :C]

    # Large batch: tile the batch axis; weights stay resident (constant index_map).
    # "parallel" semantics lets v7x shard grid steps across its two TensorCores.
    TB = batch_block
    Bp = _round_up(B, TB)
    if Bp != B:
        x_b = jnp.pad(x_b, ((0, Bp - B), (0, 0)))
    out_p = pl.pallas_call(
        kernel,
        out_shape=jax.ShapeDtypeStruct((Bp, Cp), jnp.float32),
        grid=(Bp // TB,),
        in_specs=[
            pl.BlockSpec((TB, D_in), lambda i: (i, 0)),
            pl.BlockSpec((D_in, 3 * Hp), lambda i: (0, 0)),
            pl.BlockSpec((1, 3 * Hp), lambda i: (0, 0)),
            pl.BlockSpec((Hp, Cp), lambda i: (0, 0)),
            pl.BlockSpec((1, Cp), lambda i: (0, 0)),
        ],
        out_specs=pl.BlockSpec((TB, Cp), lambda i: (i, 0)),
        compiler_params=pltpu.CompilerParams(
            dimension_semantics=("parallel",)
        ),
    )(x_b, w_gate_t, b_gate, w_fc_t, b_fc_p)
    return out_p[:B, :C]


def _reference_forward(x, w_ih, w_hh, b_ih, b_hh, w_fc, b_fc):
    """Pure-JAX f32 reference of the FULL PyTorch forward (eval mode), including the
    w_hh and forget-gate terms (with explicit zero h0/c0), so it validates the kernel's
    simplifications independently."""
    B = x.shape[0]
    H = w_ih.shape[0] // 4
    h0 = jnp.zeros((B, H), jnp.float32)
    c0 = jnp.zeros((B, H), jnp.float32)
    gates = x @ w_ih.T + h0 @ w_hh.T + b_ih + b_hh
    i = jax.nn.sigmoid(gates[:, 0 * H:1 * H])
    f = jax.nn.sigmoid(gates[:, 1 * H:2 * H])
    g = jnp.tanh(gates[:, 2 * H:3 * H])
    o = jax.nn.sigmoid(gates[:, 3 * H:4 * H])
    c = f * c0 + i * g
    h = o * jnp.tanh(c)
    return h @ w_fc.T + b_fc  # dropout is identity in eval mode


if __name__ == "__main__":
    # Small, module-consistent shapes.
    B, D_in, H, C = 8, 16, 32, 8

    key = jax.random.PRNGKey(0)
    ks = jax.random.split(key, 8)
    k = 1.0 / jnp.sqrt(H)

    x = jax.random.normal(ks[0], (B, D_in), jnp.float32)
    # PyTorch-style uniform(-1/sqrt(H), 1/sqrt(H)) init, deterministic from PRNGKey(0).
    w_ih = jax.random.uniform(ks[1], (4 * H, D_in), jnp.float32, -k, k)
    w_hh = jax.random.uniform(ks[2], (4 * H, H), jnp.float32, -k, k)
    b_ih = jax.random.uniform(ks[3], (4 * H,), jnp.float32, -k, k)
    b_hh = jax.random.uniform(ks[4], (4 * H,), jnp.float32, -k, k)
    w_fc = jax.random.uniform(ks[5], (C, H), jnp.float32, -k, k)
    b_fc = jax.random.uniform(ks[6], (C,), jnp.float32, -k, k)

    # Small-batch (no-grid) path.
    out = lstm_classifier_forward(x, w_ih, w_hh, b_ih, b_hh, w_fc, b_fc)
    out = jax.block_until_ready(out)
    ref = _reference_forward(x, w_ih, w_hh, b_ih, b_hh, w_fc, b_fc)
    assert out.shape == (B, C)
    # MXU operands are bf16 (f32 accumulation) -> bf16-appropriate tolerance vs f32 reference.
    assert jnp.allclose(out, ref, atol=3e-2, rtol=3e-2), "mismatch vs reference (small batch)"

    # Large-batch (batch-tiled, parallel-grid) path.
    B2 = 2048
    x2 = jax.random.normal(ks[7], (B2, D_in), jnp.float32)
    out2 = lstm_classifier_forward(x2, w_ih, w_hh, b_ih, b_hh, w_fc, b_fc)
    out2 = jax.block_until_ready(out2)
    ref2 = _reference_forward(x2, w_ih, w_hh, b_ih, b_hh, w_fc, b_fc)
    assert out2.shape == (B2, C)
    assert jnp.allclose(out2, ref2, atol=3e-2, rtol=3e-2), "mismatch vs reference (large batch)"

    print("KERNEL_OK")
</pallas_src>

<mosaic_0001>
module attributes {stable_mosaic.version = 11 : i64} {
  func.func @kernel(%arg0: memref<8x16xbf16, #tpu.memory_space<vmem>>, %arg1: memref<16x384xbf16, #tpu.memory_space<vmem>>, %arg2: memref<1x384xf32, #tpu.memory_space<vmem>>, %arg3: memref<128x128xbf16, #tpu.memory_space<vmem>>, %arg4: memref<1x128xf32, #tpu.memory_space<vmem>>, %arg5: memref<8x128xf32, #tpu.memory_space<vmem>>) attributes {dimension_semantics = [], scalar_prefetch = 0 : i64, scratch_operands = 0 : i64, tpu.core_type = #tpu.core_type<tc>} {
    %c0 = arith.constant 0 : index
    %c0_0 = arith.constant 0 : index
    %0 = vector.load %arg0[%c0, %c0_0] : memref<8x16xbf16, #tpu.memory_space<vmem>>, vector<8x16xbf16>
    %c0_1 = arith.constant 0 : index
    %c0_2 = arith.constant 0 : index
    %1 = vector.load %arg1[%c0_1, %c0_2] : memref<16x384xbf16, #tpu.memory_space<vmem>>, vector<16x384xbf16>
    %cst = arith.constant dense<0.000000e+00> : vector<8x384xf32>
    %2 = tpu.matmul %0, %1, %cst {dimension_numbers = #tpu.dot_dimension_numbers<[1], [0], [0], [1], [0, 0, 1, 1], [], []>} : vector<8x16xbf16>, vector<16x384xbf16>, vector<8x384xf32> -> vector<8x384xf32>
    %c0_3 = arith.constant 0 : index
    %c0_4 = arith.constant 0 : index
    %3 = vector.load %arg2[%c0_3, %c0_4] : memref<1x384xf32, #tpu.memory_space<vmem>>, vector<1x384xf32>
    %4 = vector.broadcast %3 : vector<1x384xf32> to vector<8x384xf32>
    %5 = arith.addf %2, %4 : vector<8x384xf32>
    %6 = vector.extract_strided_slice %5 {offsets = [0, 0], sizes = [8, 128], strides = [1, 1]} : vector<8x384xf32> to vector<8x128xf32>
    %7 = arith.negf %6 : vector<8x128xf32>
    %8 = math.exp %7 : vector<8x128xf32>
    %cst_5 = arith.constant 1.000000e+00 : f32
    %9 = vector.broadcast %cst_5 : f32 to vector<8x128xf32>
    %10 = arith.addf %9, %8 : vector<8x128xf32>
    %11 = arith.divf %9, %10 : vector<8x128xf32>
    %12 = vector.extract_strided_slice %5 {offsets = [0, 128], sizes = [8, 128], strides = [1, 1]} : vector<8x384xf32> to vector<8x128xf32>
    %13 = math.tanh %12 : vector<8x128xf32>
    %14 = vector.extract_strided_slice %5 {offsets = [0, 256], sizes = [8, 128], strides = [1, 1]} : vector<8x384xf32> to vector<8x128xf32>
    %15 = arith.negf %14 : vector<8x128xf32>
    %16 = math.exp %15 : vector<8x128xf32>
    %cst_6 = arith.constant 1.000000e+00 : f32
    %17 = vector.broadcast %cst_6 : f32 to vector<8x128xf32>
    %18 = arith.addf %17, %16 : vector<8x128xf32>
    %19 = arith.divf %17, %18 : vector<8x128xf32>
    %20 = arith.mulf %11, %13 : vector<8x128xf32>
    %21 = math.tanh %20 : vector<8x128xf32>
    %22 = arith.mulf %19, %21 : vector<8x128xf32>
    %23 = arith.truncf %22 : vector<8x128xf32> to vector<8x128xbf16>
    %c0_7 = arith.constant 0 : index
    %c0_8 = arith.constant 0 : index
    %24 = vector.load %arg3[%c0_7, %c0_8] : memref<128x128xbf16, #tpu.memory_space<vmem>>, vector<128x128xbf16>
    %cst_9 = arith.constant dense<0.000000e+00> : vector<8x128xf32>
    %25 = tpu.matmul %23, %24, %cst_9 {dimension_numbers = #tpu.dot_dimension_numbers<[1], [0], [0], [1], [0, 0, 1, 1], [], []>} : vector<8x128xbf16>, vector<128x128xbf16>, vector<8x128xf32> -> vector<8x128xf32>
    %c0_10 = arith.constant 0 : index
    %c0_11 = arith.constant 0 : index
    %26 = vector.load %arg4[%c0_10, %c0_11] : memref<1x128xf32, #tpu.memory_space<vmem>>, vector<1x128xf32>
    %27 = vector.broadcast %26 : vector<1x128xf32> to vector<8x128xf32>
    %28 = arith.addf %25, %27 : vector<8x128xf32>
    %c0_12 = arith.constant 0 : index
    %c0_13 = arith.constant 0 : index
    %29 = vector.load %arg5[%c0_12, %c0_13] : memref<8x128xf32, #tpu.memory_space<vmem>>, vector<8x128xf32>
    tpu.vector_store %arg5[%c0_12, %c0_13], %28 {strides = array<i32>} : memref<8x128xf32, #tpu.memory_space<vmem>>, vector<8x128xf32>,
    return
  }
}

</mosaic_0001>

<llo_original>
// kernel: lstm_classifier_forward.1
$region0: #{lstm_classifier_forward.1}
  #allocation0 [shape = 'u32[]', space=smem, size = 0x4, offset = 0x4, fixed_abs, tag = 'smem constant byte address 0x4 - core index']
  #allocation1 [shape = 'u32[144,128]{1,0:T(1,128)}', space=vmem, size = 0x12000, scoped, tag = 'internal scratch']
  %s0 = inlined_call_operand.vmem [shape: bf16[8,16], index: 0, kind: input, shape index: {}]
  %s1 = inlined_call_operand.vmem [shape: bf16[16,384], index: 1, kind: input, shape index: {}]
  %s2 = inlined_call_operand.vmem [shape: f32[1,384], index: 2, kind: input, shape index: {}]
  %s3 = inlined_call_operand.vmem [shape: bf16[128,128], index: 3, kind: input, shape index: {}]
  %s4 = inlined_call_operand.vmem [shape: f32[1,128], index: 4, kind: input, shape index: {}]
  %s5 = inlined_call_operand.hbm [shape: f32[8,128], index: 5, kind: output, shape index: {}]
  %s6 = sld [smem:[#allocation0]]
  $region30: #{lstm_classifier_forward.1} parent=0
    _
  %s8 = ssub.s32 1, %s6
  %s9 = scalar_select 0, %s8, %s6
  $region1: #{lstm_classifier_forward.1} parent=0
    #allocation2 [shape = 'u8[4096]{0}', space=vmem, size = 0x1000, scoped, tag = 'output window, operand 0, single buffered']
    #allocation3 [shape = 's32[1]{0}', space=sflag, size = 0x4, scoped, tag = 'scoped memory for lstm_classifier_forward.1']
    %10 = vsyncpa [#allocation3], 0
    // Predicated region
    $region2: #{lstm_classifier_forward.1} parent=1 // pred_check
      _
    $region3: #{lstm_classifier_forward.1} parent=1 // pred_check_branch
      %12 = sbr.rel (0) target = $region5
    $region4: #{lstm_classifier_forward.1} parent=1 // pred_region
      _
    $region5: #{lstm_classifier_forward.1} parent=1 // pred_fallthru
      _
    // Predicated region
    $region6: #{lstm_classifier_forward.1} parent=1 // pred_check
      _
    $region7: #{lstm_classifier_forward.1} parent=1 // pred_check_branch
      %14 = sbr.rel (0) target = $region9
    $region8: #{lstm_classifier_forward.1} parent=1 // pred_region
      _
    $region9: #{lstm_classifier_forward.1} parent=1 // pred_fallthru
      _
    // Predicated region
    $region10: #{lstm_classifier_forward.1} parent=1 // pred_check
      _
    $region11: #{lstm_classifier_forward.1} parent=1 // pred_check_branch
      %16 = sbr.rel (0) target = $region13
    $region12: #{lstm_classifier_forward.1} parent=1 // pred_region
      _
    $region13: #{lstm_classifier_forward.1} parent=1 // pred_fallthru
      _
    // Predicated region
    $region14: #{lstm_classifier_forward.1} parent=1 // pred_check
      _
    $region15: #{lstm_classifier_forward.1} parent=1 // pred_check_branch
      %18 = sbr.rel (0) target = $region17
    $region16: #{lstm_classifier_forward.1} parent=1 // pred_region
      _
    $region17: #{lstm_classifier_forward.1} parent=1 // pred_fallthru
      _
    // Predicated region
    $region18: #{lstm_classifier_forward.1} parent=1 // pred_check
      _
    $region19: #{lstm_classifier_forward.1} parent=1 // pred_check_branch
      %20 = sbr.rel (0) target = $region21
    $region20: #{lstm_classifier_forward.1} parent=1 // pred_region
      _
    $region21: #{lstm_classifier_forward.1} parent=1 // pred_fallthru
      _
    %v22 = vld [vmem:[%s0] sm:$0xf]
    %v23 = vld [vmem:[%s1] sm:$0xff]
    %v24 = vld [vmem:[%s1 + $0x8] sm:$0xf]
    %v25 = vld [vmem:[%s1 + $0xc] sm:$0xff]
    %v26 = vld [vmem:[%s1 + $0x14] sm:$0xf]
    %v27 = vld [vmem:[%s2] sm:$0x7]
    %v29 = vlaneseq
    %v30 = vshrl.u32 %v29, 7
    %v31 = vsub.s32 0, %v30
    %v32 = vrot.slane %v27, %v31
    %v33 = vlaneseq
    %v34 = vshrl.u32 %v33, 7
    %v35 = vsub.s32 1, %v34
    %v36 = vrot.slane %v27, %v35
    %v37 = vlaneseq
    %v38 = vshrl.u32 %v37, 7
    %v39 = vsub.s32 2, %v38
    %v40 = vrot.slane %v27, %v39
    %v48 = vunpack.c.l.b16 %v23
    %v49 = vunpack.c.h.b16 %v23
    %v50 = vunpack.c.l.b16 %v24
    %v51 = vunpack.c.l.b16 %v25
    %v52 = vunpack.c.h.b16 %v25
    %v53 = vunpack.c.l.b16 %v26
    %v54 = vpack.c.b16 %v51, %v48
    %v55 = vpack.c.b16 %v52, %v49
    %v56 = vpack.c.b16 %v53, %v50
    %vm60 = vcmask 130048
    %v62 = vsel %vm60, %v22, 0
    %64 = vmatprep.subr.bf16.mxu0 0
    %65 = vmatpush1.bf16.msra.mxu0 0
    %66 = vmatprep.subr.bf16.mxu0 0
    %67 = vmatpush1.bf16.msra.mxu0 0
    %68 = vmatprep.subr.bf16.mxu0 0
    %69 = vmatpush1.bf16.msra.mxu0 0
    %70 = vmatprep.subr.bf16.mxu0 0
    %71 = vmatpush1.bf16.msra.mxu0 0
    %72 = vmatprep.subr.bf16.mxu0 0
    %73 = vmatpush1.bf16.msra.mxu0 0
    %74 = vmatprep.subr.bf16.mxu0 0
    %75 = vmatpush1.bf16.msra.mxu0 0
    %76 = vmatprep.subr.bf16.mxu0 0
    %77 = vmatpush1.bf16.msra.mxu0 0
    %78 = vmatprep.subr.bf16.mxu0 %v55
    %79 = vmatpush1.bf16.msra.mxu0 %v54
    %80 = vmatprep.subr.bf16.mxu0 0
    %81 = vmatpush2.bf16.msra.mxu0 0
    %82 = vmatprep.subr.bf16.mxu0 0
    %83 = vmatpush2.bf16.msra.mxu0 0
    %84 = vmatprep.subr.bf16.mxu0 0
    %85 = vmatpush2.bf16.msra.mxu0 0
    %86 = vmatprep.subr.bf16.mxu0 0
    %87 = vmatpush2.bf16.msra.mxu0 0
    %88 = vmatprep.subr.bf16.mxu0 0
    %89 = vmatpush2.bf16.msra.mxu0 0
    %90 = vmatprep.subr.bf16.mxu0 0
    %91 = vmatpush2.bf16.msra.mxu0 0
    %92 = vmatprep.subr.bf16.mxu0 0
    %93 = vmatpush2.bf16.msra.mxu0 0
    %94 = vmatprep.subr.bf16.mxu0 0
    %95 = vmatpush2.bf16.msra.mxu0 0
    %96 = vmatprep.mubr.bf16.mxu0 0
    %97 = vmatmul.mubr.bf16.gmra.mxu0 %v62
    %v98 = vpop.f32.mrf.mxu0
    %v99 = vadd.f32 %v32, %v98
    %v100 = vpop.f32.mrf.mxu0
    %v101 = vadd.f32 %v36, %v100
    %v102 = vpop.f32.mrf.mxu0
    %v103 = vpop.f32.mrf.mxu0
    %104 = vdwg.mxu0
    %105 = vmatprep.subr.bf16.mxu0 0
    %106 = vmatpush1.bf16.msra.mxu0 0
    %107 = vmatprep.subr.bf16.mxu0 0
    %108 = vmatpush1.bf16.msra.mxu0 0
    %109 = vmatprep.subr.bf16.mxu0 0
    %110 = vmatpush1.bf16.msra.mxu0 0
    %111 = vmatprep.subr.bf16.mxu0 0
    %112 = vmatpush1.bf16.msra.mxu0 0
    %113 = vmatprep.subr.bf16.mxu0 0
    %114 = vmatpush1.bf16.msra.mxu0 0
    %115 = vmatprep.subr.bf16.mxu0 0
    %116 = vmatpush1.bf16.msra.mxu0 0
    %117 = vmatprep.subr.bf16.mxu0 0
    %118 = vmatpush1.bf16.msra.mxu0 0
    %119 = vmatprep.subr.bf16.mxu0 0
    %120 = vmatpush1.bf16.msra.mxu0 %v56
    %121 = vmatprep.subr.bf16.mxu0 0
    %122 = vmatpush2.bf16.msra.mxu0 0
    %123 = vmatprep.subr.bf16.mxu0 0
    %124 = vmatpush2.bf16.msra.mxu0 0
    %125 = vmatprep.subr.bf16.mxu0 0
    %126 = vmatpush2.bf16.msra.mxu0 0
    %127 = vmatprep.subr.bf16.mxu0 0
    %128 = vmatpush2.bf16.msra.mxu0 0
    %129 = vmatprep.subr.bf16.mxu0 0
    %130 = vmatpush2.bf16.msra.mxu0 0
    %131 = vmatprep.subr.bf16.mxu0 0
    %132 = vmatpush2.bf16.msra.mxu0 0
    %133 = vmatprep.subr.bf16.mxu0 0
    %134 = vmatpush2.bf16.msra.mxu0 0
    %135 = vmatprep.subr.bf16.mxu0 0
    %136 = vmatpush2.bf16.msra.mxu0 0
    %137 = vmatprep.mubr.bf16.mxu0 0
    %138 = vmatmul.mubr.bf16.gmra.mxu0 %v62
    %v139 = vpop.f32.mrf.mxu0
    %v140 = vadd.f32 %v40, %v139
    %v141 = vpop.f32.mrf.mxu0
    %v142 = vpop.f32.mrf.mxu0
    %v143 = vpop.f32.mrf.mxu0
    %144 = vdwg.mxu0
    %v145 = vxor.u32 %v99, 2147483648
    %v146 = vmul.f32 %v145, 1.442695
    %v147 = vpow.pop %v146
    %v148 = vadd.f32 %v147, 1.0
    %v149 = vrcp.pop %v148
    %v150 = vmul.f32 1.0, %v149
    %v151 = vtanh.pop %v101
    %v152 = vxor.u32 %v140, 2147483648
    %v153 = vmul.f32 %v152, 1.442695
    %v154 = vpow.pop %v153
    %v155 = vadd.f32 %v154, 1.0
    %v156 = vrcp.pop %v155
    %v157 = vmul.f32 1.0, %v156
    %v158 = vmul.f32 %v150, %v151
    %v159 = vtanh.pop %v158
    %v160 = vmul.f32 %v157, %v159
    %v161 = vpack.c.bf16 %v160, %v160
    %v162 = vld [vmem:[%s3] sm:$0xf]
    %v163 = vld [vmem:[%s3 + $0x4] sm:$0xf]
    %v164 = vld [vmem:[%s3 + $0x8] sm:$0xf]
    %v165 = vld [vmem:[%s3 + $0xc] sm:$0xf]
    %v166 = vld [vmem:[%s3 + $0x10] sm:$0xf]
    %v167 = vld [vmem:[%s3 + $0x14] sm:$0xf]
    %v168 = vld [vmem:[%s3 + $0x18] sm:$0xf]
    %v169 = vld [vmem:[%s3 + $0x1c] sm:$0xf]
    %v170 = vld [vmem:[%s3 + $0x20] sm:$0xf]
    %v171 = vld [vmem:[%s3 + $0x24] sm:$0xf]
    %v172 = vld [vmem:[%s3 + $0x28] sm:$0xf]
    %v173 = vld [vmem:[%s3 + $0x2c] sm:$0xf]
    %v174 = vld [vmem:[%s3 + $0x30] sm:$0xf]
    %v175 = vld [vmem:[%s3 + $0x34] sm:$0xf]
    %v176 = vld [vmem:[%s3 + $0x38] sm:$0xf]
    %v177 = vld [vmem:[%s3 + $0x3c] sm:$0xf]
    %v178 = vld [vmem:[%s4] sm:$0x1]
    %v180 = vlaneseq
    %v181 = vshrl.u32 %v180, 7
    %v182 = vsub.s32 0, %v181
    %v183 = vrot.slane %v178, %v182
    %v201 = vunpack.c.l.b16 %v162
    %v202 = vunpack.c.l.b16 %v163
    %v203 = vunpack.c.l.b16 %v164
    %v204 = vunpack.c.l.b16 %v165
    %v205 = vunpack.c.l.b16 %v166
    %v206 = vunpack.c.l.b16 %v167
    %v207 = vunpack.c.l.b16 %v168
    %v208 = vunpack.c.l.b16 %v169
    %v209 = vunpack.c.l.b16 %v170
    %v210 = vunpack.c.l.b16 %v171
    %v211 = vunpack.c.l.b16 %v172
    %v212 = vunpack.c.l.b16 %v173
    %v213 = vunpack.c.l.b16 %v174
    %v214 = vunpack.c.l.b16 %v175
    %v215 = vunpack.c.l.b16 %v176
    %v216 = vunpack.c.l.b16 %v177
    %v217 = vpack.c.b16 %v202, %v201
    %v218 = vpack.c.b16 %v204, %v203
    %v219 = vpack.c.b16 %v206, %v205
    %v220 = vpack.c.b16 %v208, %v207
    %v221 = vpack.c.b16 %v210, %v209
    %v222 = vpack.c.b16 %v212, %v211
    %v223 = vpack.c.b16 %v214, %v213
    %v224 = vpack.c.b16 %v216, %v215
    %233 = vmatprep.subr.bf16.mxu0 0
    %234 = vmatpush1.bf16.msra.mxu0 %v224
    %235 = vmatprep.subr.bf16.mxu0 0
    %236 = vmatpush1.bf16.msra.mxu0 %v223
    %237 = vmatprep.subr.bf16.mxu0 0
    %238 = vmatpush1.bf16.msra.mxu0 %v222
    %239 = vmatprep.subr.bf16.mxu0 0
    %240 = vmatpush1.bf16.msra.mxu0 %v221
    %241 = vmatprep.subr.bf16.mxu0 0
    %242 = vmatpush1.bf16.msra.mxu0 %v220
    %243 = vmatprep.subr.bf16.mxu0 0
    %244 = vmatpush1.bf16.msra.mxu0 %v219
    %245 = vmatprep.subr.bf16.mxu0 0
    %246 = vmatpush1.bf16.msra.mxu0 %v218
    %247 = vmatprep.subr.bf16.mxu0 0
    %248 = vmatpush1.bf16.msra.mxu0 %v217
    %249 = vmatprep.subr.bf16.mxu0 0
    %250 = vmatpush2.bf16.msra.mxu0 0
    %251 = vmatprep.subr.bf16.mxu0 0
    %252 = vmatpush2.bf16.msra.mxu0 0
    %253 = vmatprep.subr.bf16.mxu0 0
    %254 = vmatpush2.bf16.msra.mxu0 0
    %255 = vmatprep.subr.bf16.mxu0 0
    %256 = vmatpush2.bf16.msra.mxu0 0
    %257 = vmatprep.subr.bf16.mxu0 0
    %258 = vmatpush2.bf16.msra.mxu0 0
    %259 = vmatprep.subr.bf16.mxu0 0
    %260 = vmatpush2.bf16.msra.mxu0 0
    %261 = vmatprep.subr.bf16.mxu0 0
    %262 = vmatpush2.bf16.msra.mxu0 0
    %263 = vmatprep.subr.bf16.mxu0 0
    %264 = vmatpush2.bf16.msra.mxu0 0
    %265 = vmatprep.mubr.bf16.mxu0 0
    %266 = vmatmul.mubr.bf16.gmra.mxu0 %v161
    %v267 = vpop.f32.mrf.mxu0
    %v268 = vadd.f32 %v183, %v267
    %v269 = vpop.f32.mrf.mxu0
    %v270 = vpop.f32.mrf.mxu0
    %v271 = vpop.f32.mrf.mxu0
    %272 = vdwg.mxu0
    %273 = vst [vmem:[#allocation2] sm:$0xff] %v268
    // Predicated region
    $region22: #{lstm_classifier_forward.1} parent=1 // pred_check
      _
    $region23: #{lstm_classifier_forward.1} parent=1 // pred_check_branch
      %275 = sbr.rel (0) target = $region25
    $region24: #{lstm_classifier_forward.1} parent=1 // pred_region
      %s277 = ssub.s32 128, 128
      %278 = vsyncadd [#allocation3], %s277
      %s280 = sshll.u32 [#allocation2], 4
      %s281 = int_to_ptr.vmem [resolvable:$true] %s280
      %283 = dma.vmem_to_hbm [thread:$0]  %s281, 128, %s5, [#allocation3]
    $region25: #{lstm_classifier_forward.1} parent=1 // pred_fallthru
      _
    // Predicated region
    $region26: #{lstm_classifier_forward.1} parent=1 // pred_check
      _
    $region27: #{lstm_classifier_forward.1} parent=1 // pred_check_branch
      %285 = sbr.rel (0) target = $region29
    $region28: #{lstm_classifier_forward.1} parent=1 // pred_region
      %286 = dma.done [#allocation3], 128
    $region29: #{lstm_classifier_forward.1} parent=1 // pred_fallthru
      _
    %287 = vsyncpa [#allocation3], 1

</llo_original>
